<compile_context>
chip_gen: v6e
topology: v6e:2x2x1
jax: 0.10.0
libtpu: 0.0.40
codegen_flags: <defaults>
</compile_context>

<pallas_src>
import functools

import jax
import jax.numpy as jnp
from jax.experimental import pallas as pl
from jax.experimental.pallas import tpu as pltpu


def _vdp_kernel(s_ref, o_ref, *, mu):
    # s_ref/o_ref: (2, TB) lane-dense blocks.  Row 0 = x, row 1 = y.
    s = s_ref[...]
    x = s[0:1, :]
    y = s[1:2, :]
    dy = mu * (1.0 - x * x) * y - x
    # Single full-block store: row 0 = dx (= y), row 1 = dy.
    o_ref[...] = jnp.concatenate([y, dy], axis=0)


def van_der_pol(state, action=None, *, mu=1.0, block_b=65536):
    """state: (B, 2), action: (B, n_control) (ignored, as in the reference).

    Returns (B, 2) state derivative.
    """
    del action  # VanDerPol dynamics ignore the control; never DMA it.
    B, n_state = state.shape
    assert n_state == 2, "VanDerPol expects a 2-dimensional state"
    dtype = state.dtype

    # Lane-dense layout: (2, B), batch along the 128-lane axis.
    st = state.T

    if B <= block_b:
        tb = B  # block == full array on the last dim -> always legal
    else:
        tb = block_b
        assert tb % 128 == 0, "block_b must be a multiple of 128 when tiling"
    grid = (pl.cdiv(B, tb),)

    out_t = pl.pallas_call(
        functools.partial(_vdp_kernel, mu=float(mu)),
        out_shape=jax.ShapeDtypeStruct((2, B), dtype),
        grid=grid,
        in_specs=[pl.BlockSpec((2, tb), lambda i: (0, i))],
        out_specs=pl.BlockSpec((2, tb), lambda i: (0, i)),
        compiler_params=pltpu.CompilerParams(
            dimension_semantics=("parallel",)
        ),
    )(st)
    return out_t.T


if __name__ == "__main__":
    key = jax.random.PRNGKey(0)
    k_state, k_action = jax.random.split(key)

    B = 8
    n_state = 2      # properties['n_state']
    n_control = 1    # properties['n_control']
    mu = 1.5         # params['mu'] (deterministic, in-script)

    state = jax.random.normal(k_state, (B, n_state), dtype=jnp.float32)
    action = jax.random.normal(k_action, (B, n_control), dtype=jnp.float32)

    out = jax.block_until_ready(van_der_pol(state, action, mu=mu))

    # Reference check in plain JAX.
    x = state[:, 0:1]
    y = state[:, 1:2]
    ref = jnp.concatenate([y, mu * (1.0 - x ** 2) * y - x], axis=1)
    assert out.shape == (B, n_state)
    assert jnp.allclose(out, ref, atol=1e-6), "mismatch vs reference (B=8)"

    # Exercise the tiled path (grid > 1, partial tail block) with a larger B.
    B2 = 300
    state2 = jax.random.normal(k_state, (B2, n_state), dtype=jnp.float32)
    out2 = jax.block_until_ready(
        van_der_pol(state2, None, mu=mu, block_b=128)
    )
    x2 = state2[:, 0:1]
    y2 = state2[:, 1:2]
    ref2 = jnp.concatenate([y2, mu * (1.0 - x2 ** 2) * y2 - x2], axis=1)
    assert out2.shape == (B2, n_state)
    assert jnp.allclose(out2, ref2, atol=1e-6), "mismatch vs reference (B=300)"

    print("KERNEL_OK")
</pallas_src>

<mosaic_0001>
module attributes {stable_mosaic.version = 11 : i64} {
  func.func @_vdp_kernel(%arg0: i32, %arg1: memref<2x8xf32, #tpu.memory_space<vmem>>, %arg2: memref<2x8xf32, #tpu.memory_space<vmem>>) attributes {dimension_semantics = [#tpu.dimension_semantics<parallel>], iteration_bounds = array<i64: 1>, scalar_prefetch = 0 : i64, scratch_operands = 0 : i64, tpu.core_type = #tpu.core_type<tc>, window_params = [{transform_indices = @transform_0, window_bounds = array<i64: 2, 8>}, {transform_indices = @transform_1, window_bounds = array<i64: 2, 8>}]} {
    %c0 = arith.constant 0 : index
    %c0_0 = arith.constant 0 : index
    %0 = vector.load %arg1[%c0, %c0_0] : memref<2x8xf32, #tpu.memory_space<vmem>>, vector<2x8xf32>
    %1 = vector.extract_strided_slice %0 {offsets = [0, 0], sizes = [1, 8], strides = [1, 1]} : vector<2x8xf32> to vector<1x8xf32>
    %2 = vector.extract_strided_slice %0 {offsets = [1, 0], sizes = [1, 8], strides = [1, 1]} : vector<2x8xf32> to vector<1x8xf32>
    %3 = arith.mulf %1, %1 : vector<1x8xf32>
    %cst = arith.constant 1.000000e+00 : f32
    %4 = vector.broadcast %cst : f32 to vector<1x8xf32>
    %5 = arith.subf %4, %3 : vector<1x8xf32>
    %cst_1 = arith.constant 1.500000e+00 : f32
    %6 = vector.broadcast %cst_1 : f32 to vector<1x8xf32>
    %7 = arith.mulf %6, %5 : vector<1x8xf32>
    %8 = arith.mulf %7, %2 : vector<1x8xf32>
    %9 = arith.subf %8, %1 : vector<1x8xf32>
    %10 = tpu.concatenate %2, %9 in 0 : vector<1x8xf32>, vector<1x8xf32> -> vector<2x8xf32>
    %c0_2 = arith.constant 0 : index
    %c0_3 = arith.constant 0 : index
    %11 = vector.load %arg2[%c0_2, %c0_3] : memref<2x8xf32, #tpu.memory_space<vmem>>, vector<2x8xf32>
    tpu.vector_store %arg2[%c0_2, %c0_3], %10 {strides = array<i32>} : memref<2x8xf32, #tpu.memory_space<vmem>>, vector<2x8xf32>,
    return
  }
  func.func @transform_0(%arg0: i32) -> (i32, i32) {
    %c0_i32 = arith.constant 0 : i32
    %c0_i32_0 = arith.constant 0 : i32
    return %c0_i32, %arg0 : i32, i32
  }
  func.func @transform_1(%arg0: i32) -> (i32, i32) {
    %c0_i32 = arith.constant 0 : i32
    %c0_i32_0 = arith.constant 0 : i32
    return %c0_i32, %arg0 : i32, i32
  }
}

</mosaic_0001>

<llo_original>
// kernel: tpu_custom_call.1
$region0: #{tpu_custom_call.1}
  #allocation0 [shape = 'u32[]', space=smem, size = 0x4, offset = 0x4, fixed_abs, tag = 'smem constant byte address 0x4 - core index']
  #allocation1 [shape = 'u32[144,128]{1,0:T(1,128)}', space=vmem, size = 0x12000, scoped, tag = 'internal scratch']
  %s0 = inlined_call_operand.hbm [shape: f32[2,8], index: 0, kind: input, shape index: {}]
  %s1 = inlined_call_operand.hbm [shape: f32[2,8], index: 1, kind: output, shape index: {}]
  %s2 = sld [smem:[#allocation0]]
  $region18: #{tpu_custom_call.1} parent=0
    _
  %s4 = ssub.s32 1, %s2
  %s5 = scalar_select 0, %s4, %s2
  $region1: #{tpu_custom_call.1} parent=0
    #allocation2 [shape = 'u8[1024]{0}', space=vmem, size = 0x400, scoped, tag = 'input window, operand 0, single buffered']
    #allocation3 [shape = 's32[1]{0}', space=sflag, size = 0x4, scoped, tag = 'scoped memory for tpu_custom_call.1']
    #allocation4 [shape = 's32[1]{0}', space=sflag, size = 0x4, scoped, tag = 'scoped memory for tpu_custom_call.1']
    #allocation5 [shape = 'u8[1024]{0}', space=vmem, size = 0x400, scoped, tag = 'output window, operand 0, single buffered']
    %6 = vsyncpa [#allocation3], 0
    %7 = vsyncpa [#allocation4], 0
    // Predicated region
    $region2: #{tpu_custom_call.1} parent=1 // pred_check
      _
    $region3: #{tpu_custom_call.1} parent=1 // pred_check_branch
      %9 = sbr.rel (0) target = $region5
    $region4: #{tpu_custom_call.1} parent=1 // pred_region
      %s11 = ssub.s32 32, 32
      %12 = vsyncadd [#allocation3], %s11
      %s14 = sshll.u32 [#allocation2], 4
      %s15 = int_to_ptr.vmem [resolvable:$true] %s14
      %17 = dma.hbm_to_vmem [thread:$0]  %s0, 32, %s15, [#allocation3]
    $region5: #{tpu_custom_call.1} parent=1 // pred_fallthru
      _
    // Predicated region
    $region6: #{tpu_custom_call.1} parent=1 // pred_check
      _
    $region7: #{tpu_custom_call.1} parent=1 // pred_check_branch
      %19 = sbr.rel (0) target = $region9
    $region8: #{tpu_custom_call.1} parent=1 // pred_region
      %20 = dma.done [#allocation3], 32
    $region9: #{tpu_custom_call.1} parent=1 // pred_fallthru
      _
    %v21 = vld [vmem:[#allocation2] sm:$0x3]
    %v22 = vmul.f32 %v21, %v21
    %v23 = vsub.f32 1.0, %v22
    %v24 = vmul.f32 %v23, 1.5
    %v26 = vrot.slane %v21, 1
    %v28 = vmul.f32 %v24, %v26
    %v29 = vsub.f32 %v28, %v21
    %v31 = vrot.slane %v29, 7
    %vm33 = vcmask 1040384
    %v34 = vsel %vm33, %v26, %v31
    %vm35 = vcmask 58368
    %36 = vst.msk [vmem:[#allocation5] sm:$0x3] %vm35, %v34
    // Predicated region
    $region10: #{tpu_custom_call.1} parent=1 // pred_check
      _
    $region11: #{tpu_custom_call.1} parent=1 // pred_check_branch
      %38 = sbr.rel (0) target = $region13
    $region12: #{tpu_custom_call.1} parent=1 // pred_region
      %s40 = ssub.s32 32, 32
      %41 = vsyncadd [#allocation4], %s40
      %s43 = sshll.u32 [#allocation5], 4
      %s44 = int_to_ptr.vmem [resolvable:$true] %s43
      %46 = dma.vmem_to_hbm [thread:$0]  %s44, 32, %s1, [#allocation4]
    $region13: #{tpu_custom_call.1} parent=1 // pred_fallthru
      _
    // Predicated region
    $region14: #{tpu_custom_call.1} parent=1 // pred_check
      _
    $region15: #{tpu_custom_call.1} parent=1 // pred_check_branch
      %48 = sbr.rel (0) target = $region17
    $region16: #{tpu_custom_call.1} parent=1 // pred_region
      %49 = dma.done [#allocation4], 32
    $region17: #{tpu_custom_call.1} parent=1 // pred_fallthru
      _
    %50 = vsyncpa [#allocation3], 1
    %51 = vsyncpa [#allocation4], 1

</llo_original>
